<compile_context>
chip_gen: v7x
topology: tpu7x:2x2x1
jax: 0.10.0
libtpu: 0.0.40
codegen_flags: <defaults>
</compile_context>

<pallas_src>
import jax
import jax.numpy as jnp
from jax.experimental import pallas as pl
from jax.experimental.pallas import tpu as pltpu


def _mult_kernel(w_ref, x_ref, o_ref):
    # w_ref: SMEM scalar (shape (1,), f32); x_ref/o_ref: VMEM tiles.
    o_ref[...] = (x_ref[...] * w_ref[0]).astype(o_ref.dtype)


def mult(x: jax.Array, weight: jax.Array) -> jax.Array:
    """Elementwise x * weight (scalar), matching Mult.forward semantics.

    Note: JAX is functional, so this returns a new array rather than mutating x
    in place as PyTorch's x.mul_() does.
    """
    orig_shape = x.shape
    dtype = x.dtype
    n = x.size

    if n == 0:  # degenerate input: nothing for the kernel to do
        return (x * weight.astype(dtype)).reshape(orig_shape)

    itemsize = jnp.dtype(dtype).itemsize
    # dtype-aware sublane multiple: 8 for 4-byte, 16 for 2-byte, 32 for 1-byte
    sub = max(8, 32 // itemsize)

    # Pick the widest lane dimension (multiple of 128) that divides n so the
    # flatten is a pure reshape (no pad, no tail slice, no extra HBM traffic).
    cols = None
    for c in (4096, 2048, 1024, 512, 256, 128):
        if n % c == 0:
            cols = c
            break

    if cols is not None:
        rows = n // cols
        x2d = x.reshape(rows, cols)
        pad = 0
    else:
        # Rare fallback: n not a multiple of 128. Pad the tail once.
        # TODO(synk): mask only the final tile in-kernel instead of padding here.
        cols = 1024
        rows = -(-n // cols)
        rows = -(-rows // sub) * sub
        pad = rows * cols - n
        x2d = jnp.pad(x.reshape(-1), (0, pad)).reshape(rows, cols)

    # Row-tile size: target ~2 MiB per block, rounded to a sublane multiple.
    target_bytes = 2 * 1024 * 1024
    tr = max(sub, (target_bytes // (cols * itemsize)) // sub * sub)
    if tr >= rows:
        tr = rows          # block equals full row extent (always a legal block shape)
    grid = (pl.cdiv(rows, tr),)

    w = weight.astype(jnp.float32).reshape(1)

    out2d = pl.pallas_call(
        _mult_kernel,
        out_shape=jax.ShapeDtypeStruct((rows, cols), dtype),
        grid_spec=pltpu.PrefetchScalarGridSpec(
            num_scalar_prefetch=0,
            grid=grid,
            in_specs=[
                pl.BlockSpec(memory_space=pltpu.SMEM),        # scalar weight
                pl.BlockSpec((tr, cols), lambda i: (i, 0)),   # x row-tile
            ],
            out_specs=pl.BlockSpec((tr, cols), lambda i: (i, 0)),
        ),
        compiler_params=pltpu.CompilerParams(
            dimension_semantics=("parallel",),
        ),
    )(w, x2d)

    if pad:
        return out2d.reshape(-1)[:n].reshape(orig_shape)
    return out2d.reshape(orig_shape)


if __name__ == "__main__":
    key = jax.random.PRNGKey(0)
    # NCHW input consistent with the module: batch=2, channels=4, 16x16 spatial
    x = jax.random.normal(key, (2, 4, 16, 16), dtype=jnp.float32)

    # Mult.__init__(mult): weight = Tensor(1).fill_(mult). Deterministic init:
    mult_value = 0.5
    weight = jnp.full((1,), mult_value, dtype=jnp.float32)

    out = mult(x, weight)
    jax.block_until_ready(out)

    # correctness check against pure-JAX reference
    ref = x * weight
    assert out.shape == x.shape and out.dtype == x.dtype
    assert jnp.allclose(out, ref, atol=1e-6), "mismatch vs reference"

    # also exercise a larger, tiled path (multiple grid steps) for sanity
    x_big = jax.random.normal(jax.random.PRNGKey(1), (8, 16, 64, 64), dtype=jnp.float32)
    out_big = mult(x_big, weight)
    jax.block_until_ready(out_big)
    assert jnp.allclose(out_big, x_big * weight, atol=1e-6), "mismatch (tiled path)"

    print("KERNEL_OK")
</pallas_src>

<mosaic_0001>
module attributes {stable_mosaic.version = 11 : i64} {
  func.func @_mult_kernel(%arg0: i32, %arg1: memref<1xf32, #tpu.memory_space<smem>>, %arg2: memref<1x2048xf32, #tpu.memory_space<vmem>>, %arg3: memref<1x2048xf32, #tpu.memory_space<vmem>>) attributes {dimension_semantics = [#tpu.dimension_semantics<parallel>], iteration_bounds = array<i64: 1>, scalar_prefetch = 0 : i64, scratch_operands = 0 : i64, tpu.core_type = #tpu.core_type<tc>, window_params = [{transform_indices = @transform_0, window_bounds = array<i64: 1>}, {transform_indices = @transform_1, window_bounds = array<i64: 1, 2048>}, {transform_indices = @transform_2, window_bounds = array<i64: 1, 2048>}]} {
    %c0 = arith.constant 0 : index
    %c0_0 = arith.constant 0 : index
    %0 = vector.load %arg2[%c0, %c0_0] : memref<1x2048xf32, #tpu.memory_space<vmem>>, vector<1x2048xf32>
    %c0_1 = arith.constant 0 : index
    %1 = memref.load %arg1[%c0_1] : memref<1xf32, #tpu.memory_space<smem>>
    %2 = vector.broadcast %1 : f32 to vector<1x2048xf32>
    %3 = arith.mulf %0, %2 : vector<1x2048xf32>
    %c0_2 = arith.constant 0 : index
    %c0_3 = arith.constant 0 : index
    %4 = vector.load %arg3[%c0_2, %c0_3] : memref<1x2048xf32, #tpu.memory_space<vmem>>, vector<1x2048xf32>
    tpu.vector_store %arg3[%c0_2, %c0_3], %3 {strides = array<i32>} : memref<1x2048xf32, #tpu.memory_space<vmem>>, vector<1x2048xf32>,
    return
  }
  func.func @transform_0(%arg0: i32) -> i32 {
    %c0_i32 = arith.constant 0 : i32
    %c0_i32_0 = arith.constant 0 : i32
    return %c0_i32 : i32
  }
  func.func @transform_1(%arg0: i32) -> (i32, i32) {
    %c0_i32 = arith.constant 0 : i32
    %c0_i32_0 = arith.constant 0 : i32
    return %arg0, %c0_i32 : i32, i32
  }
  func.func @transform_2(%arg0: i32) -> (i32, i32) {
    %c0_i32 = arith.constant 0 : i32
    %c0_i32_0 = arith.constant 0 : i32
    return %arg0, %c0_i32 : i32, i32
  }
}

</mosaic_0001>

<llo_original>
// kernel: tpu_custom_call.1
$region0: #{tpu_custom_call.1}
  #allocation0 [shape = 'u32[]', space=smem, size = 0x4, offset = 0x4, fixed_abs, tag = 'smem constant byte address 0x4 - core index']
  #allocation1 [shape = 'u32[144,128]{1,0:T(1,128)}', space=vmem, size = 0x12000, scoped, tag = 'internal scratch']
  #allocation2 [shape = 'f32[1]{0:T(128)S(6)}', space=smem, size = 0x200, scoped, tag = 'scoped memory for tpu_custom_call.1']
  %s0 = inlined_call_operand.<no memory space> [shape: f32[1], index: 0, kind: input, shape index: {}]
  %s1 = inlined_call_operand.hbm [shape: f32[1,2048], index: 1, kind: input, shape index: {}]
  %s2 = inlined_call_operand.hbm [shape: f32[1,2048], index: 2, kind: output, shape index: {}]
  %s3 = sld [smem:[#allocation0]]
  $region22: #{tpu_custom_call.1} parent=0
    _
  %s5 = ssub.s32 1, %s3
  %s6 = scalar_select 0, %s5, %s3
  %7 = sst [smem:[#allocation2]] %s0
  $region1: #{tpu_custom_call.1} parent=0
    #allocation3 [shape = 'u8[8192]{0}', space=vmem, size = 0x2000, scoped, tag = 'input window, operand 1, single buffered']
    #allocation4 [shape = 's32[1]{0}', space=sflag, size = 0x4, scoped, tag = 'scoped memory for tpu_custom_call.1']
    #allocation5 [shape = 's32[1]{0}', space=sflag, size = 0x4, scoped, tag = 'scoped memory for tpu_custom_call.1']
    #allocation6 [shape = 'u8[8192]{0}', space=vmem, size = 0x2000, scoped, tag = 'output window, operand 0, single buffered']
    %8 = vsyncpa [#allocation4], 0
    %9 = vsyncpa [#allocation5], 0
    // Predicated region
    $region2: #{tpu_custom_call.1} parent=1 // pred_check
      _
    $region3: #{tpu_custom_call.1} parent=1 // pred_check_branch
      %11 = sbr.rel (0) target = $region5
    $region4: #{tpu_custom_call.1} parent=1 // pred_region
      _
    $region5: #{tpu_custom_call.1} parent=1 // pred_fallthru
      _
    // Predicated region
    $region6: #{tpu_custom_call.1} parent=1 // pred_check
      _
    $region7: #{tpu_custom_call.1} parent=1 // pred_check_branch
      %13 = sbr.rel (0) target = $region9
    $region8: #{tpu_custom_call.1} parent=1 // pred_region
      %s15 = ssub.s32 256, 256
      %16 = vsyncadd [#allocation4], %s15
      %s18 = sshll.u32 [#allocation3], 4
      %s19 = int_to_ptr.vmem [resolvable:$true] %s18
      %21 = dma.hbm_to_vmem [thread:$0]  %s1, 256, %s19, [#allocation4]
    $region9: #{tpu_custom_call.1} parent=1 // pred_fallthru
      _
    // Predicated region
    $region10: #{tpu_custom_call.1} parent=1 // pred_check
      _
    $region11: #{tpu_custom_call.1} parent=1 // pred_check_branch
      %23 = sbr.rel (0) target = $region13
    $region12: #{tpu_custom_call.1} parent=1 // pred_region
      %24 = dma.done [#allocation4], 256
    $region13: #{tpu_custom_call.1} parent=1 // pred_fallthru
      _
    %v25 = vld [vmem:[#allocation3] sm:$0xff]
    %v26 = vld [vmem:[#allocation3 + $0x8] sm:$0xff]
    %s27 = sld [smem:[#allocation2]]
    %v28 = vstv %s27
    %v29 = vmul.f32 %v25, %v28
    %v30 = vmul.f32 %v26, %v28
    %31 = vst [vmem:[#allocation6] sm:$0xff] %v29
    %32 = vst [vmem:[#allocation6 + $0x8] sm:$0xff] %v30
    // Predicated region
    $region14: #{tpu_custom_call.1} parent=1 // pred_check
      _
    $region15: #{tpu_custom_call.1} parent=1 // pred_check_branch
      %34 = sbr.rel (0) target = $region17
    $region16: #{tpu_custom_call.1} parent=1 // pred_region
      %s36 = ssub.s32 256, 256
      %37 = vsyncadd [#allocation5], %s36
      %s39 = sshll.u32 [#allocation6], 4
      %s40 = int_to_ptr.vmem [resolvable:$true] %s39
      %42 = dma.vmem_to_hbm [thread:$0]  %s40, 256, %s2, [#allocation5]
    $region17: #{tpu_custom_call.1} parent=1 // pred_fallthru
      _
    // Predicated region
    $region18: #{tpu_custom_call.1} parent=1 // pred_check
      _
    $region19: #{tpu_custom_call.1} parent=1 // pred_check_branch
      %44 = sbr.rel (0) target = $region21
    $region20: #{tpu_custom_call.1} parent=1 // pred_region
      %45 = dma.done [#allocation5], 256
    $region21: #{tpu_custom_call.1} parent=1 // pred_fallthru
      _
    %46 = vsyncpa [#allocation4], 1
    %47 = vsyncpa [#allocation5], 1

</llo_original>
